<compile_context>
chip_gen: v7x
topology: tpu7x:2x2x1
jax: 0.10.0
libtpu: 0.0.40
codegen_flags: <defaults>
</compile_context>

<pallas_src>
import functools

import jax
import jax.numpy as jnp
from jax.experimental import pallas as pl
from jax.experimental.pallas import tpu as pltpu  # noqa: F401  (TPU backend)


# ----------------------------------------------------------------------------
# Fused kernel: conv(as one matmul) + BN + ReLU + GAP(sum) + all heads
# Runs once (no grid) — the whole problem fits trivially in VMEM.
# ----------------------------------------------------------------------------
def _fused_model_kernel(patches_ref, cw_ref, scale_ref, bias_ref,
                        hw_ref, hb_ref, out_ref, *, N, HW):
    # patches_ref: (N*HW, 9*Cin)  lane-dense im2col slab
    # cw_ref:      (9*Cin, Cout)  conv weight, im2col layout
    # scale_ref:   (1, Cout)      BN scale  (1/(H*W) GAP divisor folded in)
    # bias_ref:    (1, Cout)      BN bias   (1/(H*W) GAP divisor folded in)
    # hw_ref:      (Cout, Ktot)   concatenated head weights
    # hb_ref:      (1, Ktot)      concatenated head biases
    # out_ref:     (N, Ktot)      concatenated head outputs
    y = jnp.dot(patches_ref[...], cw_ref[...],
                preferred_element_type=jnp.float32)           # conv: (N*HW, Cout)
    y = y * scale_ref[...] + bias_ref[...]                    # BatchNorm (eval)
    y = jnp.maximum(y, 0.0)                                   # ReLU
    feat = jnp.sum(y.reshape(N, HW, y.shape[-1]), axis=1)     # GAP (divisor folded)
    out_ref[...] = (jnp.dot(feat, hw_ref[...],
                            preferred_element_type=jnp.float32)
                    + hb_ref[...])                            # all heads, one matmul


# ----------------------------------------------------------------------------
# BaseModel.forward: backbone + dict of heads, one fused pallas_call
# ----------------------------------------------------------------------------
def base_model_forward(x_nchw, params):
    """x_nchw: (N, Cin, H, W) float32 -> dict of (N, out_dim) head outputs."""
    N, Cin, H, W = x_nchw.shape
    HW = H * W
    conv_w = params["conv_w"]                      # (3, 3, Cin, Cout), HWIO
    Cout = conv_w.shape[-1]

    # --- plain-JAX glue: NCHW->NHWC, pad=1, im2col to a lane-dense slab ---
    x = jnp.transpose(x_nchw, (0, 2, 3, 1))
    xp = jnp.pad(x, ((0, 0), (1, 1), (1, 1), (0, 0)))
    patches = jnp.concatenate(
        [xp[:, dy:dy + H, dx:dx + W, :] for dy in range(3) for dx in range(3)],
        axis=-1)                                   # (N, H, W, 9*Cin)
    patches = patches.reshape(N * HW, 9 * Cin)     # (N*HW, 36)

    cw = conv_w.reshape(9 * Cin, Cout)             # row order (dy, dx, cin) matches patches

    # Fold the GAP divisor into the (positive-scale-safe, pre-ReLU) BN affine.
    inv_hw = 1.0 / float(HW)
    scale = params["bn_scale"] * inv_hw            # (1, Cout)
    bias = params["bn_bias"] * inv_hw              # (1, Cout)

    # Concatenate all heads into one matmul.
    head_names = list(params["heads"].keys())
    head_ws = [params["heads"][k][0] for k in head_names]
    head_bs = [params["heads"][k][1] for k in head_names]
    hw_cat = jnp.concatenate(head_ws, axis=1)      # (Cout, Ktot)
    hb_cat = jnp.concatenate(head_bs, axis=1)      # (1, Ktot)
    Ktot = hw_cat.shape[1]

    kernel = functools.partial(_fused_model_kernel, N=N, HW=HW)
    out = pl.pallas_call(
        kernel,
        out_shape=jax.ShapeDtypeStruct((N, Ktot), jnp.float32),
        in_specs=[
            pl.BlockSpec((N * HW, 9 * Cin), lambda: (0, 0)),
            pl.BlockSpec((9 * Cin, Cout), lambda: (0, 0)),
            pl.BlockSpec((1, Cout), lambda: (0, 0)),
            pl.BlockSpec((1, Cout), lambda: (0, 0)),
            pl.BlockSpec((Cout, Ktot), lambda: (0, 0)),
            pl.BlockSpec((1, Ktot), lambda: (0, 0)),
        ],
        out_specs=pl.BlockSpec((N, Ktot), lambda: (0, 0)),
    )(patches, cw, scale, bias, hw_cat, hb_cat)

    # Split the concatenated output slab back into the per-head dict.
    y = {}
    off = 0
    for k, w in zip(head_names, head_ws):
        d = w.shape[1]
        y[k] = out[:, off:off + d]
        off += d
    return y


def init_params(key, cin=4, cout=32, heads_cfg=None):
    """Deterministic parameter init mirroring BaseModel.initialize():
       - Conv2d: kaiming_uniform_ (fan_in, nonlinearity='relu'), bias = 0
       - BatchNorm2d: weight = 1, bias = 0 (running stats: mean 0, var 1)
       - Linear heads: default uniform(-1/sqrt(fan_in), 1/sqrt(fan_in))"""
    if heads_cfg is None:
        heads_cfg = {"logits": 10, "aux": 8}
    k_conv, k_heads = jax.random.split(key)

    fan_in = cin * 3 * 3
    bound = jnp.sqrt(2.0) * jnp.sqrt(3.0 / fan_in)  # kaiming uniform, relu gain
    conv_w = jax.random.uniform(
        k_conv, (3, 3, cin, cout), jnp.float32, -bound, bound)

    eps = 1e-5
    gamma = jnp.ones((cout,), jnp.float32)
    beta = jnp.zeros((cout,), jnp.float32)
    running_mean = jnp.zeros((cout,), jnp.float32)
    running_var = jnp.ones((cout,), jnp.float32)
    conv_b = jnp.zeros((cout,), jnp.float32)
    scale = gamma / jnp.sqrt(running_var + eps)
    bias = beta + (conv_b - running_mean) * scale

    heads = {}
    hkeys = jax.random.split(k_heads, len(heads_cfg))
    for hk, (name, out_dim) in zip(hkeys, sorted(heads_cfg.items())):
        kb = 1.0 / jnp.sqrt(float(cout))
        hw = jax.random.uniform(hk, (cout, out_dim), jnp.float32, -kb, kb)
        hb = jnp.zeros((1, out_dim), jnp.float32)
        heads[name] = (hw, hb)

    return {
        "conv_w": conv_w,
        "bn_scale": scale.reshape(1, cout),
        "bn_bias": bias.reshape(1, cout),
        "heads": heads,
    }


# TODO(synk): predict()/freeze()/unfreeze() are training-control utilities
# (eval-mode switch, requires_grad toggles) with no kernel-level equivalent.

if __name__ == "__main__":
    key = jax.random.PRNGKey(0)
    k_x, k_p = jax.random.split(key)

    # PyTorch-style NCHW input.
    x = jax.random.normal(k_x, (2, 4, 16, 16), jnp.float32)
    params = init_params(k_p, cin=4, cout=32, heads_cfg={"logits": 10, "aux": 8})

    out = base_model_forward(x, params)
    out = jax.block_until_ready(out)

    assert set(out.keys()) == {"logits", "aux"}
    assert out["logits"].shape == (2, 10)
    assert out["aux"].shape == (2, 8)
    assert all(jnp.all(jnp.isfinite(v)) for v in out.values())
    print("KERNEL_OK")
</pallas_src>

<mosaic_0001>
module attributes {stable_mosaic.version = 11 : i64} {
  func.func @_fused_model_kernel(%arg0: memref<512x36xf32, #tpu.memory_space<vmem>>, %arg1: memref<36x32xf32, #tpu.memory_space<vmem>>, %arg2: memref<1x32xf32, #tpu.memory_space<vmem>>, %arg3: memref<1x32xf32, #tpu.memory_space<vmem>>, %arg4: memref<32x18xf32, #tpu.memory_space<vmem>>, %arg5: memref<1x18xf32, #tpu.memory_space<vmem>>, %arg6: memref<2x18xf32, #tpu.memory_space<vmem>>) attributes {dimension_semantics = [], scalar_prefetch = 0 : i64, scratch_operands = 0 : i64, tpu.core_type = #tpu.core_type<tc>} {
    %c0 = arith.constant 0 : index
    %c0_0 = arith.constant 0 : index
    %0 = vector.load %arg0[%c0, %c0_0] : memref<512x36xf32, #tpu.memory_space<vmem>>, vector<512x36xf32>
    %c0_1 = arith.constant 0 : index
    %c0_2 = arith.constant 0 : index
    %1 = vector.load %arg1[%c0_1, %c0_2] : memref<36x32xf32, #tpu.memory_space<vmem>>, vector<36x32xf32>
    %cst = arith.constant dense<0.000000e+00> : vector<512x32xf32>
    %2 = tpu.matmul %0, %1, %cst {dimension_numbers = #tpu.dot_dimension_numbers<[1], [0], [0], [1], [0, 0, 1, 1], [], []>} : vector<512x36xf32>, vector<36x32xf32>, vector<512x32xf32> -> vector<512x32xf32>
    %c0_3 = arith.constant 0 : index
    %c0_4 = arith.constant 0 : index
    %3 = vector.load %arg2[%c0_3, %c0_4] : memref<1x32xf32, #tpu.memory_space<vmem>>, vector<1x32xf32>
    %4 = vector.broadcast %3 : vector<1x32xf32> to vector<512x32xf32>
    %5 = arith.mulf %2, %4 : vector<512x32xf32>
    %c0_5 = arith.constant 0 : index
    %c0_6 = arith.constant 0 : index
    %6 = vector.load %arg3[%c0_5, %c0_6] : memref<1x32xf32, #tpu.memory_space<vmem>>, vector<1x32xf32>
    %7 = vector.broadcast %6 : vector<1x32xf32> to vector<512x32xf32>
    %8 = arith.addf %5, %7 : vector<512x32xf32>
    %cst_7 = arith.constant 0.000000e+00 : f32
    %9 = vector.broadcast %cst_7 : f32 to vector<512x32xf32>
    %10 = arith.maximumf %8, %9 : vector<512x32xf32>
    %11 = vector.shape_cast %10 : vector<512x32xf32> to vector<2x256x32xf32>
    %cst_8 = arith.constant dense<0.000000e+00> : vector<2x32xf32>
    %12 = vector.multi_reduction <add>, %11, %cst_8 [1] : vector<2x256x32xf32> to vector<2x32xf32>
    %c0_9 = arith.constant 0 : index
    %c0_10 = arith.constant 0 : index
    %13 = vector.load %arg4[%c0_9, %c0_10] : memref<32x18xf32, #tpu.memory_space<vmem>>, vector<32x18xf32>
    %cst_11 = arith.constant dense<0.000000e+00> : vector<2x18xf32>
    %14 = tpu.matmul %12, %13, %cst_11 {dimension_numbers = #tpu.dot_dimension_numbers<[1], [0], [0], [1], [0, 0, 1, 1], [], []>} : vector<2x32xf32>, vector<32x18xf32>, vector<2x18xf32> -> vector<2x18xf32>
    %c0_12 = arith.constant 0 : index
    %c0_13 = arith.constant 0 : index
    %15 = vector.load %arg5[%c0_12, %c0_13] : memref<1x18xf32, #tpu.memory_space<vmem>>, vector<1x18xf32>
    %16 = vector.broadcast %15 : vector<1x18xf32> to vector<2x18xf32>
    %17 = arith.addf %14, %16 : vector<2x18xf32>
    %c0_14 = arith.constant 0 : index
    %c0_15 = arith.constant 0 : index
    %18 = vector.load %arg6[%c0_14, %c0_15] : memref<2x18xf32, #tpu.memory_space<vmem>>, vector<2x18xf32>
    tpu.vector_store %arg6[%c0_14, %c0_15], %17 {strides = array<i32>} : memref<2x18xf32, #tpu.memory_space<vmem>>, vector<2x18xf32>,
    return
  }
}

</mosaic_0001>

<llo_original>
// kernel: tpu_custom_call.1
$region0: #{tpu_custom_call.1}
  #allocation0 [shape = 'u32[]', space=smem, size = 0x4, offset = 0x4, fixed_abs, tag = 'smem constant byte address 0x4 - core index']
  #allocation1 [shape = 'u32[144,128]{1,0:T(1,128)}', space=vmem, size = 0x12000, scoped, tag = 'internal scratch']
  %s0 = inlined_call_operand.vmem [shape: f32[512,36], index: 0, kind: input, shape index: {}]
  %s1 = inlined_call_operand.vmem [shape: f32[36,32], index: 1, kind: input, shape index: {}]
  %s2 = inlined_call_operand.vmem [shape: f32[1,32], index: 2, kind: input, shape index: {}]
  %s3 = inlined_call_operand.vmem [shape: f32[1,32], index: 3, kind: input, shape index: {}]
  %s4 = inlined_call_operand.vmem [shape: f32[32,18], index: 4, kind: input, shape index: {}]
  %s5 = inlined_call_operand.vmem [shape: f32[1,18], index: 5, kind: input, shape index: {}]
  %s6 = inlined_call_operand.hbm [shape: f32[2,18], index: 6, kind: output, shape index: {}]
  %s7 = sld [smem:[#allocation0]]
  $region34: #{tpu_custom_call.1} parent=0
    _
  %s9 = ssub.s32 1, %s7
  %s10 = scalar_select 0, %s9, %s7
  $region1: #{tpu_custom_call.1} parent=0
    #allocation2 [shape = 'u8[1024]{0}', space=vmem, size = 0x400, scoped, tag = 'output window, operand 0, single buffered']
    #allocation3 [shape = 's32[1]{0}', space=sflag, size = 0x4, scoped, tag = 'scoped memory for tpu_custom_call.1']
    %11 = vsyncpa [#allocation3], 0
    // Predicated region
    $region2: #{tpu_custom_call.1} parent=1 // pred_check
      _
    $region3: #{tpu_custom_call.1} parent=1 // pred_check_branch
      %13 = sbr.rel (0) target = $region5
    $region4: #{tpu_custom_call.1} parent=1 // pred_region
      _
    $region5: #{tpu_custom_call.1} parent=1 // pred_fallthru
      _
    // Predicated region
    $region6: #{tpu_custom_call.1} parent=1 // pred_check
      _
    $region7: #{tpu_custom_call.1} parent=1 // pred_check_branch
      %15 = sbr.rel (0) target = $region9
    $region8: #{tpu_custom_call.1} parent=1 // pred_region
      _
    $region9: #{tpu_custom_call.1} parent=1 // pred_fallthru
      _
    // Predicated region
    $region10: #{tpu_custom_call.1} parent=1 // pred_check
      _
    $region11: #{tpu_custom_call.1} parent=1 // pred_check_branch
      %17 = sbr.rel (0) target = $region13
    $region12: #{tpu_custom_call.1} parent=1 // pred_region
      _
    $region13: #{tpu_custom_call.1} parent=1 // pred_fallthru
      _
    // Predicated region
    $region14: #{tpu_custom_call.1} parent=1 // pred_check
      _
    $region15: #{tpu_custom_call.1} parent=1 // pred_check_branch
      %19 = sbr.rel (0) target = $region17
    $region16: #{tpu_custom_call.1} parent=1 // pred_region
      _
    $region17: #{tpu_custom_call.1} parent=1 // pred_fallthru
      _
    // Predicated region
    $region18: #{tpu_custom_call.1} parent=1 // pred_check
      _
    $region19: #{tpu_custom_call.1} parent=1 // pred_check_branch
      %21 = sbr.rel (0) target = $region21
    $region20: #{tpu_custom_call.1} parent=1 // pred_region
      _
    $region21: #{tpu_custom_call.1} parent=1 // pred_fallthru
      _
    // Predicated region
    $region22: #{tpu_custom_call.1} parent=1 // pred_check
      _
    $region23: #{tpu_custom_call.1} parent=1 // pred_check_branch
      %23 = sbr.rel (0) target = $region25
    $region24: #{tpu_custom_call.1} parent=1 // pred_region
      _
    $region25: #{tpu_custom_call.1} parent=1 // pred_fallthru
      _
    %v24 = vld [vmem:[%s0] sm:$0xff]
    %v25 = vld [vmem:[%s0 + $0x8] sm:$0xff]
    %v26 = vld [vmem:[%s0 + $0x10] sm:$0xff]
    %v27 = vld [vmem:[%s0 + $0x18] sm:$0xff]
    %v28 = vld [vmem:[%s0 + $0x20] sm:$0xff]
    %v29 = vld [vmem:[%s0 + $0x28] sm:$0xff]
    %v30 = vld [vmem:[%s0 + $0x30] sm:$0xff]
    %v31 = vld [vmem:[%s0 + $0x38] sm:$0xff]
    %v32 = vld [vmem:[%s0 + $0x40] sm:$0xff]
    %v33 = vld [vmem:[%s0 + $0x48] sm:$0xff]
    %v34 = vld [vmem:[%s0 + $0x50] sm:$0xff]
    %v35 = vld [vmem:[%s0 + $0x58] sm:$0xff]
    %v36 = vld [vmem:[%s0 + $0x60] sm:$0xff]
    %v37 = vld [vmem:[%s0 + $0x68] sm:$0xff]
    %v38 = vld [vmem:[%s0 + $0x70] sm:$0xff]
    %v39 = vld [vmem:[%s0 + $0x78] sm:$0xff]
    %v40 = vld [vmem:[%s0 + $0x80] sm:$0xff]
    %v41 = vld [vmem:[%s0 + $0x88] sm:$0xff]
    %v42 = vld [vmem:[%s0 + $0x90] sm:$0xff]
    %v43 = vld [vmem:[%s0 + $0x98] sm:$0xff]
    %v44 = vld [vmem:[%s0 + $0xa0] sm:$0xff]
    %v45 = vld [vmem:[%s0 + $0xa8] sm:$0xff]
    %v46 = vld [vmem:[%s0 + $0xb0] sm:$0xff]
    %v47 = vld [vmem:[%s0 + $0xb8] sm:$0xff]
    %v48 = vld [vmem:[%s0 + $0xc0] sm:$0xff]
    %v49 = vld [vmem:[%s0 + $0xc8] sm:$0xff]
    %v50 = vld [vmem:[%s0 + $0xd0] sm:$0xff]
    %v51 = vld [vmem:[%s0 + $0xd8] sm:$0xff]
    %v52 = vld [vmem:[%s0 + $0xe0] sm:$0xff]
    %v53 = vld [vmem:[%s0 + $0xe8] sm:$0xff]
    %v54 = vld [vmem:[%s0 + $0xf0] sm:$0xff]
    %v55 = vld [vmem:[%s0 + $0xf8] sm:$0xff]
    %v56 = vld [vmem:[%s0 + $0x100] sm:$0xff]
    %v57 = vld [vmem:[%s0 + $0x108] sm:$0xff]
    %v58 = vld [vmem:[%s0 + $0x110] sm:$0xff]
    %v59 = vld [vmem:[%s0 + $0x118] sm:$0xff]
    %v60 = vld [vmem:[%s0 + $0x120] sm:$0xff]
    %v61 = vld [vmem:[%s0 + $0x128] sm:$0xff]
    %v62 = vld [vmem:[%s0 + $0x130] sm:$0xff]
    %v63 = vld [vmem:[%s0 + $0x138] sm:$0xff]
    %v64 = vld [vmem:[%s0 + $0x140] sm:$0xff]
    %v65 = vld [vmem:[%s0 + $0x148] sm:$0xff]
    %v66 = vld [vmem:[%s0 + $0x150] sm:$0xff]
    %v67 = vld [vmem:[%s0 + $0x158] sm:$0xff]
    %v68 = vld [vmem:[%s0 + $0x160] sm:$0xff]
    %v69 = vld [vmem:[%s0 + $0x168] sm:$0xff]
    %v70 = vld [vmem:[%s0 + $0x170] sm:$0xff]
    %v71 = vld [vmem:[%s0 + $0x178] sm:$0xff]
    %v72 = vld [vmem:[%s0 + $0x180] sm:$0xff]
    %v73 = vld [vmem:[%s0 + $0x188] sm:$0xff]
    %v74 = vld [vmem:[%s0 + $0x190] sm:$0xff]
    %v75 = vld [vmem:[%s0 + $0x198] sm:$0xff]
    %v76 = vld [vmem:[%s0 + $0x1a0] sm:$0xff]
    %v77 = vld [vmem:[%s0 + $0x1a8] sm:$0xff]
    %v78 = vld [vmem:[%s0 + $0x1b0] sm:$0xff]
    %v79 = vld [vmem:[%s0 + $0x1b8] sm:$0xff]
    %v80 = vld [vmem:[%s0 + $0x1c0] sm:$0xff]
    %v81 = vld [vmem:[%s0 + $0x1c8] sm:$0xff]
    %v82 = vld [vmem:[%s0 + $0x1d0] sm:$0xff]
    %v83 = vld [vmem:[%s0 + $0x1d8] sm:$0xff]
    %v84 = vld [vmem:[%s0 + $0x1e0] sm:$0xff]
    %v85 = vld [vmem:[%s0 + $0x1e8] sm:$0xff]
    %v86 = vld [vmem:[%s0 + $0x1f0] sm:$0xff]
    %v87 = vld [vmem:[%s0 + $0x1f8] sm:$0xff]
    %v88 = vld [vmem:[%s1] sm:$0xff]
    %v89 = vld [vmem:[%s1 + $0x8] sm:$0xff]
    %v90 = vld [vmem:[%s1 + $0x10] sm:$0xff]
    %v91 = vld [vmem:[%s1 + $0x18] sm:$0xff]
    %v92 = vld [vmem:[%s1 + $0x20] sm:$0xf]
    %vm93 = vcmask 293888
    %v95 = vsel %vm93, %v24, 0
    %v98 = vsel %vm93, %v25, 0
    %v101 = vsel %vm93, %v26, 0
    %v104 = vsel %vm93, %v27, 0
    %v107 = vsel %vm93, %v28, 0
    %v110 = vsel %vm93, %v29, 0
    %v113 = vsel %vm93, %v30, 0
    %v116 = vsel %vm93, %v31, 0
    %v119 = vsel %vm93, %v32, 0
    %v122 = vsel %vm93, %v33, 0
    %v125 = vsel %vm93, %v34, 0
    %v128 = vsel %vm93, %v35, 0
    %v131 = vsel %vm93, %v36, 0
    %v134 = vsel %vm93, %v37, 0
    %v137 = vsel %vm93, %v38, 0
    %v140 = vsel %vm93, %v39, 0
    %v143 = vsel %vm93, %v40, 0
    %v146 = vsel %vm93, %v41, 0
    %v149 = vsel %vm93, %v42, 0
    %v152 = vsel %vm93, %v43, 0
    %v155 = vsel %vm93, %v44, 0
    %v158 = vsel %vm93, %v45, 0
    %v161 = vsel %vm93, %v46, 0
    %v164 = vsel %vm93, %v47, 0
    %v167 = vsel %vm93, %v48, 0
    %v170 = vsel %vm93, %v49, 0
    %v173 = vsel %vm93, %v50, 0
    %v176 = vsel %vm93, %v51, 0
    %v179 = vsel %vm93, %v52, 0
    %v182 = vsel %vm93, %v53, 0
    %v185 = vsel %vm93, %v54, 0
    %v188 = vsel %vm93, %v55, 0
    %v191 = vsel %vm93, %v56, 0
    %v194 = vsel %vm93, %v57, 0
    %v197 = vsel %vm93, %v58, 0
    %v200 = vsel %vm93, %v59, 0
    %v203 = vsel %vm93, %v60, 0
    %v206 = vsel %vm93, %v61, 0
    %v209 = vsel %vm93, %v62, 0
    %v212 = vsel %vm93, %v63, 0
    %v215 = vsel %vm93, %v64, 0
    %v218 = vsel %vm93, %v65, 0
    %v221 = vsel %vm93, %v66, 0
    %v224 = vsel %vm93, %v67, 0
    %v227 = vsel %vm93, %v68, 0
    %v230 = vsel %vm93, %v69, 0
    %v233 = vsel %vm93, %v70, 0
    %v236 = vsel %vm93, %v71, 0
    %v239 = vsel %vm93, %v72, 0
    %v242 = vsel %vm93, %v73, 0
    %v245 = vsel %vm93, %v74, 0
    %v248 = vsel %vm93, %v75, 0
    %v251 = vsel %vm93, %v76, 0
    %v254 = vsel %vm93, %v77, 0
    %v257 = vsel %vm93, %v78, 0
    %v260 = vsel %vm93, %v79, 0
    %v263 = vsel %vm93, %v80, 0
    %v266 = vsel %vm93, %v81, 0
    %v269 = vsel %vm93, %v82, 0
    %v272 = vsel %vm93, %v83, 0
    %v275 = vsel %vm93, %v84, 0
    %v278 = vsel %vm93, %v85, 0
    %v281 = vsel %vm93, %v86, 0
    %v284 = vsel %vm93, %v87, 0
    %vm286 = vcmask 1043456
    %v288 = vsel %vm286, %v92, 0
    %290 = vmatprep.subr.mxu0 0.0
    %291 = vmatpush1.msra.mxu0 %v88
    %292 = vmatprep.subr.mxu0 0.0
    %293 = vmatpush1.msra.mxu0 %v89
    %294 = vmatprep.subr.mxu0 0.0
    %295 = vmatpush1.msra.mxu0 %v90
    %296 = vmatprep.subr.mxu0 0.0
    %297 = vmatpush1.msra.mxu0 %v91
    %298 = vmatprep.subr.mxu0 0.0
    %299 = vmatpush1.msra.mxu0 %v288
    %300 = vmatprep.subr.mxu0 0.0
    %301 = vmatpush1.msra.mxu0 0.0
    %302 = vmatprep.subr.mxu0 0.0
    %303 = vmatpush1.msra.mxu0 0.0
    %304 = vmatprep.subr.mxu0 0.0
    %305 = vmatpush1.msra.mxu0 0.0
    %306 = vmatprep.subr.mxu0 0.0
    %307 = vmatpush1.msra.mxu0 0.0
    %308 = vmatprep.subr.mxu0 0.0
    %309 = vmatpush1.msra.mxu0 0.0
    %310 = vmatprep.subr.mxu0 0.0
    %311 = vmatpush1.msra.mxu0 0.0
    %312 = vmatprep.subr.mxu0 0.0
    %313 = vmatpush1.msra.mxu0 0.0
    %314 = vmatprep.subr.mxu0 0.0
    %315 = vmatpush1.msra.mxu0 0.0
    %316 = vmatprep.subr.mxu0 0.0
    %317 = vmatpush1.msra.mxu0 0.0
    %318 = vmatprep.subr.mxu0 0.0
    %319 = vmatpush1.msra.mxu0 0.0
    %320 = vmatprep.subr.mxu0 0.0
    %321 = vmatpush1.msra.mxu0 0.0
    %322 = vmatprep.subr.mxu0 0.0
    %323 = vmatpush1.msra.mxu0 0.0
    %324 = vmatprep.subr.mxu0 0.0
    %325 = vmatpush1.msra.mxu0 0.0
    %326 = vmatprep.subr.mxu0 0.0
    %327 = vmatpush1.msra.mxu0 0.0
    %328 = vmatprep.subr.mxu0 0.0
    %329 = vmatpush1.msra.mxu0 0.0
    %330 = vmatprep.subr.mxu0 0.0
    %331 = vmatpush1.msra.mxu0 0.0
    %332 = vmatprep.subr.mxu0 0.0
    %333 = vmatpush1.msra.mxu0 0.0
    %334 = vmatprep.subr.mxu0 0.0
    %335 = vmatpush1.msra.mxu0 0.0
    %336 = vmatprep.subr.mxu0 0.0
    %337 = vmatpush1.msra.mxu0 0.0
    %338 = vmatprep.subr.mxu0 0.0
    %339 = vmatpush1.msra.mxu0 0.0
    %340 = vmatprep.subr.mxu0 0.0
    %341 = vmatpush1.msra.mxu0 0.0
    %342 = vmatprep.subr.mxu0 0.0
    %343 = vmatpush1.msra.mxu0 0.0
    %344 = vmatprep.subr.mxu0 0.0
    %345 = vmatpush1.msra.mxu0 0.0
    %346 = vmatprep.subr.mxu0 0.0
    %347 = vmatpush1.msra.mxu0 0.0
    %348 = vmatprep.subr.mxu0 0.0
    %349 = vmatpush1.msra.mxu0 0.0
    %350 = vmatprep.subr.mxu0 0.0
    %351 = vmatpush1.msra.mxu0 0.0
    %352 = vmatprep.subr.mxu0 0.0
    %353 = vmatpush1.msra.mxu0 0.0
    %354 = vmatprep.mubr.f32.mxu0 0.0
    %355 = vmatmul.mubr.f32.gmra.mrb[0].mxu0 %v95
    %v356 = vpop.f32.mrb[0].mxu0
    %v357 = vadd.f32 0.0, %v356
    %v358 = vpop.f32.mrb[0].mxu0
    %359 = vmatprep.mubr.f32.mxu0 0.0
    %360 = vmatmul.mubr.f32.gmra.mrb[0].mxu0 %v98
    %v361 = vpop.f32.mrb[0].mxu0
    %v362 = vadd.f32 0.0, %v361
    %v363 = vpop.f32.mrb[0].mxu0
    %364 = vmatprep.mubr.f32.mxu0 0.0
    %365 = vmatmul.mubr.f32.gmra.mrb[0].mxu0 %v101
    %v366 = vpop.f32.mrb[0].mxu0
    %v367 = vadd.f32 0.0, %v366
    %v368 = vpop.f32.mrb[0].mxu0
    %369 = vmatprep.mubr.f32.mxu0 0.0
    %370 = vmatmul.mubr.f32.gmra.mrb[0].mxu0 %v104
    %v371 = vpop.f32.mrb[0].mxu0
    %v372 = vadd.f32 0.0, %v371
    %v373 = vpop.f32.mrb[0].mxu0
    %374 = vmatprep.mubr.f32.mxu0 0.0
    %375 = vmatmul.mubr.f32.gmra.mrb[0].mxu0 %v107
    %v376 = vpop.f32.mrb[0].mxu0
    %v377 = vadd.f32 0.0, %v376
    %v378 = vpop.f32.mrb[0].mxu0
    %379 = vmatprep.mubr.f32.mxu0 0.0
    %380 = vmatmul.mubr.f32.gmra.mrb[0].mxu0 %v110
    %v381 = vpop.f32.mrb[0].mxu0
    %v382 = vadd.f32 0.0, %v381
    %v383 = vpop.f32.mrb[0].mxu0
    %384 = vmatprep.mubr.f32.mxu0 0.0
    %385 = vmatmul.mubr.f32.gmra.mrb[0].mxu0 %v113
    %v386 = vpop.f32.mrb[0].mxu0
    %v387 = vadd.f32 0.0, %v386
    %v388 = vpop.f32.mrb[0].mxu0
    %389 = vmatprep.mubr.f32.mxu0 0.0
    %390 = vmatmul.mubr.f32.gmra.mrb[0].mxu0 %v116
    %v391 = vpop.f32.mrb[0].mxu0
    %v392 = vadd.f32 0.0, %v391
    %v393 = vpop.f32.mrb[0].mxu0
    %394 = vmatprep.mubr.f32.mxu0 0.0
    %395 = vmatmul.mubr.f32.gmra.mrb[0].mxu0 %v119
    %v396 = vpop.f32.mrb[0].mxu0
    %v397 = vadd.f32 0.0, %v396
    %v398 = vpop.f32.mrb[0].mxu0
    %399 = vmatprep.mubr.f32.mxu0 0.0
    %400 = vmatmul.mubr.f32.gmra.mrb[0].mxu0 %v122
    %v401 = vpop.f32.mrb[0].mxu0
    %v402 = vadd.f32 0.0, %v401
    %v403 = vpop.f32.mrb[0].mxu0
    %404 = vmatprep.mubr.f32.mxu0 0.0
    %405 = vmatmul.mubr.f32.gmra.mrb[0].mxu0 %v125
    %v406 = vpop.f32.mrb[0].mxu0
    %v407 = vadd.f32 0.0, %v406
    %v408 = vpop.f32.mrb[0].mxu0
    %409 = vmatprep.mubr.f32.mxu0 0.0
    %410 = vmatmul.mubr.f32.gmra.mrb[0].mxu0 %v128
    %v411 = vpop.f32.mrb[0].mxu0
    %v412 = vadd.f32 0.0, %v411
    %v413 = vpop.f32.mrb[0].mxu0
    %414 = vmatprep.mubr.f32.mxu0 0.0
    %415 = vmatmul.mubr.f32.gmra.mrb[0].mxu0 %v131
    %v416 = vpop.f32.mrb[0].mxu0
    %v417 = vadd.f32 0.0, %v416
    %v418 = vpop.f32.mrb[0].mxu0
    %419 = vmatprep.mubr.f32.mxu0 0.0
    %420 = vmatmul.mubr.f32.gmra.mrb[0].mxu0 %v134
    %v421 = vpop.f32.mrb[0].mxu0
    %v422 = vadd.f32 0.0, %v421
    %v423 = vpop.f32.mrb[0].mxu0
    %424 = vmatprep.mubr.f32.mxu0 0.0
    %425 = vmatmul.mubr.f32.gmra.mrb[0].mxu0 %v137
    %v426 = vpop.f32.mrb[0].mxu0
    %v427 = vadd.f32 0.0, %v426
    %v428 = vpop.f32.mrb[0].mxu0
    %429 = vmatprep.mubr.f32.mxu0 0.0
    %430 = vmatmul.mubr.f32.gmra.mrb[0].mxu0 %v140
    %v431 = vpop.f32.mrb[0].mxu0
    %v432 = vadd.f32 0.0, %v431
    %v433 = vpop.f32.mrb[0].mxu0
    %434 = vmatprep.mubr.f32.mxu0 0.0
    %435 = vmatmul.mubr.f32.gmra.mrb[0].mxu0 %v143
    %v436 = vpop.f32.mrb[0].mxu0
    %v437 = vadd.f32 0.0, %v436
    %v438 = vpop.f32.mrb[0].mxu0
    %439 = vmatprep.mubr.f32.mxu0 0.0
    %440 = vmatmul.mubr.f32.gmra.mrb[0].mxu0 %v146
    %v441 = vpop.f32.mrb[0].mxu0
    %v442 = vadd.f32 0.0, %v441
    %v443 = vpop.f32.mrb[0].mxu0
    %444 = vmatprep.mubr.f32.mxu0 0.0
    %445 = vmatmul.mubr.f32.gmra.mrb[0].mxu0 %v149
    %v446 = vpop.f32.mrb[0].mxu0
    %v447 = vadd.f32 0.0, %v446
    %v448 = vpop.f32.mrb[0].mxu0
    %449 = vmatprep.mubr.f32.mxu0 0.0
    %450 = vmatmul.mubr.f32.gmra.mrb[0].mxu0 %v152
    %v451 = vpop.f32.mrb[0].mxu0
    %v452 = vadd.f32 0.0, %v451
    %v453 = vpop.f32.mrb[0].mxu0
    %454 = vmatprep.mubr.f32.mxu0 0.0
    %455 = vmatmul.mubr.f32.gmra.mrb[0].mxu0 %v155
    %v456 = vpop.f32.mrb[0].mxu0
    %v457 = vadd.f32 0.0, %v456
    %v458 = vpop.f32.mrb[0].mxu0
    %459 = vmatprep.mubr.f32.mxu0 0.0
    %460 = vmatmul.mubr.f32.gmra.mrb[0].mxu0 %v158
    %v461 = vpop.f32.mrb[0].mxu0
    %v462 = vadd.f32 0.0, %v461
    %v463 = vpop.f32.mrb[0].mxu0
    %464 = vmatprep.mubr.f32.mxu0 0.0
    %465 = vmatmul.mubr.f32.gmra.mrb[0].mxu0 %v161
    %v466 = vpop.f32.mrb[0].mxu0
    %v467 = vadd.f32 0.0, %v466
    %v468 = vpop.f32.mrb[0].mxu0
    %469 = vmatprep.mubr.f32.mxu0 0.0
    %470 = vmatmul.mubr.f32.gmra.mrb[0].mxu0 %v164
    %v471 = vpop.f32.mrb[0].mxu0
    %v472 = vadd.f32 0.0, %v471
    %v473 = vpop.f32.mrb[0].mxu0
    %474 = vmatprep.mubr.f32.mxu0 0.0
    %475 = vmatmul.mubr.f32.gmra.mrb[0].mxu0 %v167
    %v476 = vpop.f32.mrb[0].mxu0
    %v477 = vadd.f32 0.0, %v476
    %v478 = vpop.f32.mrb[0].mxu0
    %479 = vmatprep.mubr.f32.mxu0 0.0
    %480 = vmatmul.mubr.f32.gmra.mrb[0].mxu0 %v170
    %v481 = vpop.f32.mrb[0].mxu0
    %v482 = vadd.f32 0.0, %v481
    %v483 = vpop.f32.mrb[0].mxu0
    %484 = vmatprep.mubr.f32.mxu0 0.0
    %485 = vmatmul.mubr.f32.gmra.mrb[0].mxu0 %v173
    %v486 = vpop.f32.mrb[0].mxu0
    %v487 = vadd.f32 0.0, %v486
    %v488 = vpop.f32.mrb[0].mxu0
    %489 = vmatprep.mubr.f32.mxu0 0.0
    %490 = vmatmul.mubr.f32.gmra.mrb[0].mxu0 %v176
    %v491 = vpop.f32.mrb[0].mxu0
    %v492 = vadd.f32 0.0, %v491
    %v493 = vpop.f32.mrb[0].mxu0
    %494 = vmatprep.mubr.f32.mxu0 0.0
    %495 = vmatmul.mubr.f32.gmra.mrb[0].mxu0 %v179
    %v496 = vpop.f32.mrb[0].mxu0
    %v497 = vadd.f32 0.0, %v496
    %v498 = vpop.f32.mrb[0].mxu0
    %499 = vmatprep.mubr.f32.mxu0 0.0
    %500 = vmatmul.mubr.f32.gmra.mrb[0].mxu0 %v182
    %v501 = vpop.f32.mrb[0].mxu0
    %v502 = vadd.f32 0.0, %v501
    %v503 = vpop.f32.mrb[0].mxu0
    %504 = vmatprep.mubr.f32.mxu0 0.0
    %505 = vmatmul.mubr.f32.gmra.mrb[0].mxu0 %v185
    %v506 = vpop.f32.mrb[0].mxu0
    %v507 = vadd.f32 0.0, %v506
    %v508 = vpop.f32.mrb[0].mxu0
    %509 = vmatprep.mubr.f32.mxu0 0.0
    %510 = vmatmul.mubr.f32.gmra.mrb[0].mxu0 %v188
    %v511 = vpop.f32.mrb[0].mxu0
    %v512 = vadd.f32 0.0, %v511
    %v513 = vpop.f32.mrb[0].mxu0
    %514 = vmatprep.mubr.f32.mxu0 0.0
    %515 = vmatmul.mubr.f32.gmra.mrb[0].mxu0 %v191
    %v516 = vpop.f32.mrb[0].mxu0
    %v517 = vadd.f32 0.0, %v516
    %v518 = vpop.f32.mrb[0].mxu0
    %519 = vmatprep.mubr.f32.mxu0 0.0
    %520 = vmatmul.mubr.f32.gmra.mrb[0].mxu0 %v194
    %v521 = vpop.f32.mrb[0].mxu0
    %v522 = vadd.f32 0.0, %v521
    %v523 = vpop.f32.mrb[0].mxu0
    %524 = vmatprep.mubr.f32.mxu0 0.0
    %525 = vmatmul.mubr.f32.gmra.mrb[0].mxu0 %v197
    %v526 = vpop.f32.mrb[0].mxu0
    %v527 = vadd.f32 0.0, %v526
    %v528 = vpop.f32.mrb[0].mxu0
    %529 = vmatprep.mubr.f32.mxu0 0.0
    %530 = vmatmul.mubr.f32.gmra.mrb[0].mxu0 %v200
    %v531 = vpop.f32.mrb[0].mxu0
    %v532 = vadd.f32 0.0, %v531
    %v533 = vpop.f32.mrb[0].mxu0
    %534 = vmatprep.mubr.f32.mxu0 0.0
    %535 = vmatmul.mubr.f32.gmra.mrb[0].mxu0 %v203
    %v536 = vpop.f32.mrb[0].mxu0
    %v537 = vadd.f32 0.0, %v536
    %v538 = vpop.f32.mrb[0].mxu0
    %539 = vmatprep.mubr.f32.mxu0 0.0
    %540 = vmatmul.mubr.f32.gmra.mrb[0].mxu0 %v206
    %v541 = vpop.f32.mrb[0].mxu0
    %v542 = vadd.f32 0.0, %v541
    %v543 = vpop.f32.mrb[0].mxu0
    %544 = vmatprep.mubr.f32.mxu0 0.0
    %545 = vmatmul.mubr.f32.gmra.mrb[0].mxu0 %v209
    %v546 = vpop.f32.mrb[0].mxu0
    %v547 = vadd.f32 0.0, %v546
    %v548 = vpop.f32.mrb[0].mxu0
    %549 = vmatprep.mubr.f32.mxu0 0.0
    %550 = vmatmul.mubr.f32.gmra.mrb[0].mxu0 %v212
    %v551 = vpop.f32.mrb[0].mxu0
    %v552 = vadd.f32 0.0, %v551
    %v553 = vpop.f32.mrb[0].mxu0
    %554 = vmatprep.mubr.f32.mxu0 0.0
    %555 = vmatmul.mubr.f32.gmra.mrb[0].mxu0 %v215
    %v556 = vpop.f32.mrb[0].mxu0
    %v557 = vadd.f32 0.0, %v556
    %v558 = vpop.f32.mrb[0].mxu0
    %559 = vmatprep.mubr.f32.mxu0 0.0
    %560 = vmatmul.mubr.f32.gmra.mrb[0].mxu0 %v218
    %v561 = vpop.f32.mrb[0].mxu0
    %v562 = vadd.f32 0.0, %v561
    %v563 = vpop.f32.mrb[0].mxu0
    %564 = vmatprep.mubr.f32.mxu0 0.0
    %565 = vmatmul.mubr.f32.gmra.mrb[0].mxu0 %v221
    %v566 = vpop.f32.mrb[0].mxu0
    %v567 = vadd.f32 0.0, %v566
    %v568 = vpop.f32.mrb[0].mxu0
    %569 = vmatprep.mubr.f32.mxu0 0.0
    %570 = vmatmul.mubr.f32.gmra.mrb[0].mxu0 %v224
    %v571 = vpop.f32.mrb[0].mxu0
    %v572 = vadd.f32 0.0, %v571
    %v573 = vpop.f32.mrb[0].mxu0
    %574 = vmatprep.mubr.f32.mxu0 0.0
    %575 = vmatmul.mubr.f32.gmra.mrb[0].mxu0 %v227
    %v576 = vpop.f32.mrb[0].mxu0
    %v577 = vadd.f32 0.0, %v576
    %v578 = vpop.f32.mrb[0].mxu0
    %579 = vmatprep.mubr.f32.mxu0 0.0
    %580 = vmatmul.mubr.f32.gmra.mrb[0].mxu0 %v230
    %v581 = vpop.f32.mrb[0].mxu0
    %v582 = vadd.f32 0.0, %v581
    %v583 = vpop.f32.mrb[0].mxu0
    %584 = vmatprep.mubr.f32.mxu0 0.0
    %585 = vmatmul.mubr.f32.gmra.mrb[0].mxu0 %v233
    %v586 = vpop.f32.mrb[0].mxu0
    %v587 = vadd.f32 0.0, %v586
    %v588 = vpop.f32.mrb[0].mxu0
    %589 = vmatprep.mubr.f32.mxu0 0.0
    %590 = vmatmul.mubr.f32.gmra.mrb[0].mxu0 %v236
    %v591 = vpop.f32.mrb[0].mxu0
    %v592 = vadd.f32 0.0, %v591
    %v593 = vpop.f32.mrb[0].mxu0
    %594 = vmatprep.mubr.f32.mxu0 0.0
    %595 = vmatmul.mubr.f32.gmra.mrb[0].mxu0 %v239
    %v596 = vpop.f32.mrb[0].mxu0
    %v597 = vadd.f32 0.0, %v596
    %v598 = vpop.f32.mrb[0].mxu0
    %599 = vmatprep.mubr.f32.mxu0 0.0
    %600 = vmatmul.mubr.f32.gmra.mrb[0].mxu0 %v242
    %v601 = vpop.f32.mrb[0].mxu0
    %v602 = vadd.f32 0.0, %v601
    %v603 = vpop.f32.mrb[0].mxu0
    %604 = vmatprep.mubr.f32.mxu0 0.0
    %605 = vmatmul.mubr.f32.gmra.mrb[0].mxu0 %v245
    %v606 = vpop.f32.mrb[0].mxu0
    %v607 = vadd.f32 0.0, %v606
    %v608 = vpop.f32.mrb[0].mxu0
    %609 = vmatprep.mubr.f32.mxu0 0.0
    %610 = vmatmul.mubr.f32.gmra.mrb[0].mxu0 %v248
    %v611 = vpop.f32.mrb[0].mxu0
    %v612 = vadd.f32 0.0, %v611
    %v613 = vpop.f32.mrb[0].mxu0
    %614 = vmatprep.mubr.f32.mxu0 0.0
    %615 = vmatmul.mubr.f32.gmra.mrb[0].mxu0 %v251
    %v616 = vpop.f32.mrb[0].mxu0
    %v617 = vadd.f32 0.0, %v616
    %v618 = vpop.f32.mrb[0].mxu0
    %619 = vmatprep.mubr.f32.mxu0 0.0
    %620 = vmatmul.mubr.f32.gmra.mrb[0].mxu0 %v254
    %v621 = vpop.f32.mrb[0].mxu0
    %v622 = vadd.f32 0.0, %v621
    %v623 = vpop.f32.mrb[0].mxu0
    %624 = vmatprep.mubr.f32.mxu0 0.0
    %625 = vmatmul.mubr.f32.gmra.mrb[0].mxu0 %v257
    %v626 = vpop.f32.mrb[0].mxu0
    %v627 = vadd.f32 0.0, %v626
    %v628 = vpop.f32.mrb[0].mxu0
    %629 = vmatprep.mubr.f32.mxu0 0.0
    %630 = vmatmul.mubr.f32.gmra.mrb[0].mxu0 %v260
    %v631 = vpop.f32.mrb[0].mxu0
    %v632 = vadd.f32 0.0, %v631
    %v633 = vpop.f32.mrb[0].mxu0
    %634 = vmatprep.mubr.f32.mxu0 0.0
    %635 = vmatmul.mubr.f32.gmra.mrb[0].mxu0 %v263
    %v636 = vpop.f32.mrb[0].mxu0
    %v637 = vadd.f32 0.0, %v636
    %v638 = vpop.f32.mrb[0].mxu0
    %639 = vmatprep.mubr.f32.mxu0 0.0
    %640 = vmatmul.mubr.f32.gmra.mrb[0].mxu0 %v266
    %v641 = vpop.f32.mrb[0].mxu0
    %v642 = vadd.f32 0.0, %v641
    %v643 = vpop.f32.mrb[0].mxu0
    %644 = vmatprep.mubr.f32.mxu0 0.0
    %645 = vmatmul.mubr.f32.gmra.mrb[0].mxu0 %v269
    %v646 = vpop.f32.mrb[0].mxu0
    %v647 = vadd.f32 0.0, %v646
    %v648 = vpop.f32.mrb[0].mxu0
    %649 = vmatprep.mubr.f32.mxu0 0.0
    %650 = vmatmul.mubr.f32.gmra.mrb[0].mxu0 %v272
    %v651 = vpop.f32.mrb[0].mxu0
    %v652 = vadd.f32 0.0, %v651
    %v653 = vpop.f32.mrb[0].mxu0
    %654 = vmatprep.mubr.f32.mxu0 0.0
    %655 = vmatmul.mubr.f32.gmra.mrb[0].mxu0 %v275
    %v656 = vpop.f32.mrb[0].mxu0
    %v657 = vadd.f32 0.0, %v656
    %v658 = vpop.f32.mrb[0].mxu0
    %659 = vmatprep.mubr.f32.mxu0 0.0
    %660 = vmatmul.mubr.f32.gmra.mrb[0].mxu0 %v278
    %v661 = vpop.f32.mrb[0].mxu0
    %v662 = vadd.f32 0.0, %v661
    %v663 = vpop.f32.mrb[0].mxu0
    %664 = vmatprep.mubr.f32.mxu0 0.0
    %665 = vmatmul.mubr.f32.gmra.mrb[0].mxu0 %v281
    %v666 = vpop.f32.mrb[0].mxu0
    %v667 = vadd.f32 0.0, %v666
    %v668 = vpop.f32.mrb[0].mxu0
    %669 = vmatprep.mubr.f32.mxu0 0.0
    %670 = vmatmul.mubr.f32.gmra.mrb[0].mxu0 %v284
    %v671 = vpop.f32.mrb[0].mxu0
    %v672 = vadd.f32 0.0, %v671
    %v673 = vpop.f32.mrb[0].mxu0
    %674 = vdwg.mxu0
    %v675 = vld [vmem:[%s2] sm:$0x1]
    %v677 = vlaneseq
    %v678 = vshrl.u32 %v677, 7
    %v679 = vsub.s32 0, %v678
    %v680 = vrot.slane %v675, %v679
    %v682 = vmul.f32 %v357, %v680
    %v683 = vmul.f32 %v362, %v680
    %v684 = vmul.f32 %v367, %v680
    %v685 = vmul.f32 %v372, %v680
    %v686 = vmul.f32 %v377, %v680
    %v687 = vmul.f32 %v382, %v680
    %v688 = vmul.f32 %v387, %v680
    %v689 = vmul.f32 %v392, %v680
    %v690 = vmul.f32 %v397, %v680
    %v691 = vmul.f32 %v402, %v680
    %v692 = vmul.f32 %v407, %v680
    %v693 = vmul.f32 %v412, %v680
    %v694 = vmul.f32 %v417, %v680
    %v695 = vmul.f32 %v422, %v680
    %v696 = vmul.f32 %v427, %v680
    %v697 = vmul.f32 %v432, %v680
    %v698 = vmul.f32 %v437, %v680
    %v699 = vmul.f32 %v442, %v680
    %v700 = vmul.f32 %v447, %v680
    %v701 = vmul.f32 %v452, %v680
    %v702 = vmul.f32 %v457, %v680
    %v703 = vmul.f32 %v462, %v680
    %v704 = vmul.f32 %v467, %v680
    %v705 = vmul.f32 %v472, %v680
    %v706 = vmul.f32 %v477, %v680
    %v707 = vmul.f32 %v482, %v680
    %v708 = vmul.f32 %v487, %v680
    %v709 = vmul.f32 %v492, %v680
    %v710 = vmul.f32 %v497, %v680
    %v711 = vmul.f32 %v502, %v680
    %v712 = vmul.f32 %v507, %v680
    %v713 = vmul.f32 %v512, %v680
    %v714 = vmul.f32 %v517, %v680
    %v715 = vmul.f32 %v522, %v680
    %v716 = vmul.f32 %v527, %v680
    %v717 = vmul.f32 %v532, %v680
    %v718 = vmul.f32 %v537, %v680
    %v719 = vmul.f32 %v542, %v680
    %v720 = vmul.f32 %v547, %v680
    %v721 = vmul.f32 %v552, %v680
    %v722 = vmul.f32 %v557, %v680
    %v723 = vmul.f32 %v562, %v680
    %v724 = vmul.f32 %v567, %v680
    %v725 = vmul.f32 %v572, %v680
    %v726 = vmul.f32 %v577, %v680
    %v727 = vmul.f32 %v582, %v680
    %v728 = vmul.f32 %v587, %v680
    %v729 = vmul.f32 %v592, %v680
    %v730 = vmul.f32 %v597, %v680
    %v731 = vmul.f32 %v602, %v680
    %v732 = vmul.f32 %v607, %v680
    %v733 = vmul.f32 %v612, %v680
    %v734 = vmul.f32 %v617, %v680
    %v735 = vmul.f32 %v622, %v680
    %v736 = vmul.f32 %v627, %v680
    %v737 = vmul.f32 %v632, %v680
    %v738 = vmul.f32 %v637, %v680
    %v739 = vmul.f32 %v642, %v680
    %v740 = vmul.f32 %v647, %v680
    %v741 = vmul.f32 %v652, %v680
    %v742 = vmul.f32 %v657, %v680
    %v743 = vmul.f32 %v662, %v680
    %v744 = vmul.f32 %v667, %v680
    %v745 = vmul.f32 %v672, %v680
    %v746 = vld [vmem:[%s3] sm:$0x1]
    %v748 = vlaneseq
    %v749 = vshrl.u32 %v748, 7
    %v750 = vsub.s32 0, %v749
    %v751 = vrot.slane %v746, %v750
    %v753 = vadd.f32 %v682, %v751
    %v754 = vadd.f32 %v683, %v751
    %v755 = vadd.f32 %v684, %v751
    %v756 = vadd.f32 %v685, %v751
    %v757 = vadd.f32 %v686, %v751
    %v758 = vadd.f32 %v687, %v751
    %v759 = vadd.f32 %v688, %v751
    %v760 = vadd.f32 %v689, %v751
    %v761 = vadd.f32 %v690, %v751
    %v762 = vadd.f32 %v691, %v751
    %v763 = vadd.f32 %v692, %v751
    %v764 = vadd.f32 %v693, %v751
    %v765 = vadd.f32 %v694, %v751
    %v766 = vadd.f32 %v695, %v751
    %v767 = vadd.f32 %v696, %v751
    %v768 = vadd.f32 %v697, %v751
    %v769 = vadd.f32 %v698, %v751
    %v770 = vadd.f32 %v699, %v751
    %v771 = vadd.f32 %v700, %v751
    %v772 = vadd.f32 %v701, %v751
    %v773 = vadd.f32 %v702, %v751
    %v774 = vadd.f32 %v703, %v751
    %v775 = vadd.f32 %v704, %v751
    %v776 = vadd.f32 %v705, %v751
    %v777 = vadd.f32 %v706, %v751
    %v778 = vadd.f32 %v707, %v751
    %v779 = vadd.f32 %v708, %v751
    %v780 = vadd.f32 %v709, %v751
    %v781 = vadd.f32 %v710, %v751
    %v782 = vadd.f32 %v711, %v751
    %v783 = vadd.f32 %v712, %v751
    %v784 = vadd.f32 %v713, %v751
    %v785 = vadd.f32 %v714, %v751
    %v786 = vadd.f32 %v715, %v751
    %v787 = vadd.f32 %v716, %v751
    %v788 = vadd.f32 %v717, %v751
    %v789 = vadd.f32 %v718, %v751
    %v790 = vadd.f32 %v719, %v751
    %v791 = vadd.f32 %v720, %v751
    %v792 = vadd.f32 %v721, %v751
    %v793 = vadd.f32 %v722, %v751
    %v794 = vadd.f32 %v723, %v751
    %v795 = vadd.f32 %v724, %v751
    %v796 = vadd.f32 %v725, %v751
    %v797 = vadd.f32 %v726, %v751
    %v798 = vadd.f32 %v727, %v751
    %v799 = vadd.f32 %v728, %v751
    %v800 = vadd.f32 %v729, %v751
    %v801 = vadd.f32 %v730, %v751
    %v802 = vadd.f32 %v731, %v751
    %v803 = vadd.f32 %v732, %v751
    %v804 = vadd.f32 %v733, %v751
    %v805 = vadd.f32 %v734, %v751
    %v806 = vadd.f32 %v735, %v751
    %v807 = vadd.f32 %v736, %v751
    %v808 = vadd.f32 %v737, %v751
    %v809 = vadd.f32 %v738, %v751
    %v810 = vadd.f32 %v739, %v751
    %v811 = vadd.f32 %v740, %v751
    %v812 = vadd.f32 %v741, %v751
    %v813 = vadd.f32 %v742, %v751
    %v814 = vadd.f32 %v743, %v751
    %v815 = vadd.f32 %v744, %v751
    %v816 = vadd.f32 %v745, %v751
    %v817 = vmax.f32 %v753, 0.0
    %v818 = vmax.f32 %v754, 0.0
    %v819 = vmax.f32 %v755, 0.0
    %v820 = vmax.f32 %v756, 0.0
    %v821 = vmax.f32 %v757, 0.0
    %v822 = vmax.f32 %v758, 0.0
    %v823 = vmax.f32 %v759, 0.0
    %v824 = vmax.f32 %v760, 0.0
    %v825 = vmax.f32 %v761, 0.0
    %v826 = vmax.f32 %v762, 0.0
    %v827 = vmax.f32 %v763, 0.0
    %v828 = vmax.f32 %v764, 0.0
    %v829 = vmax.f32 %v765, 0.0
    %v830 = vmax.f32 %v766, 0.0
    %v831 = vmax.f32 %v767, 0.0
    %v832 = vmax.f32 %v768, 0.0
    %v833 = vmax.f32 %v769, 0.0
    %v834 = vmax.f32 %v770, 0.0
    %v835 = vmax.f32 %v771, 0.0
    %v836 = vmax.f32 %v772, 0.0
    %v837 = vmax.f32 %v773, 0.0
    %v838 = vmax.f32 %v774, 0.0
    %v839 = vmax.f32 %v775, 0.0
    %v840 = vmax.f32 %v776, 0.0
    %v841 = vmax.f32 %v777, 0.0
    %v842 = vmax.f32 %v778, 0.0
    %v843 = vmax.f32 %v779, 0.0
    %v844 = vmax.f32 %v780, 0.0
    %v845 = vmax.f32 %v781, 0.0
    %v846 = vmax.f32 %v782, 0.0
    %v847 = vmax.f32 %v783, 0.0
    %v848 = vmax.f32 %v784, 0.0
    %v849 = vmax.f32 %v785, 0.0
    %v850 = vmax.f32 %v786, 0.0
    %v851 = vmax.f32 %v787, 0.0
    %v852 = vmax.f32 %v788, 0.0
    %v853 = vmax.f32 %v789, 0.0
    %v854 = vmax.f32 %v790, 0.0
    %v855 = vmax.f32 %v791, 0.0
    %v856 = vmax.f32 %v792, 0.0
    %v857 = vmax.f32 %v793, 0.0
    %v858 = vmax.f32 %v794, 0.0
    %v859 = vmax.f32 %v795, 0.0
    %v860 = vmax.f32 %v796, 0.0
    %v861 = vmax.f32 %v797, 0.0
    %v862 = vmax.f32 %v798, 0.0
    %v863 = vmax.f32 %v799, 0.0
    %v864 = vmax.f32 %v800, 0.0
    %v865 = vmax.f32 %v801, 0.0
    %v866 = vmax.f32 %v802, 0.0
    %v867 = vmax.f32 %v803, 0.0
    %v868 = vmax.f32 %v804, 0.0
    %v869 = vmax.f32 %v805, 0.0
    %v870 = vmax.f32 %v806, 0.0
    %v871 = vmax.f32 %v807, 0.0
    %v872 = vmax.f32 %v808, 0.0
    %v873 = vmax.f32 %v809, 0.0
    %v874 = vmax.f32 %v810, 0.0
    %v875 = vmax.f32 %v811, 0.0
    %v876 = vmax.f32 %v812, 0.0
    %v877 = vmax.f32 %v813, 0.0
    %v878 = vmax.f32 %v814, 0.0
    %v879 = vmax.f32 %v815, 0.0
    %v880 = vmax.f32 %v816, 0.0
    %vm881 = vcmask 261120
    %v882 = vsel %vm881, %v817, 0.0
    %v883 = vsel %vm881, %v818, 0.0
    %v884 = vadd.f32 %v882, %v883
    %v885 = vsel %vm881, %v819, 0.0
    %v886 = vadd.f32 %v884, %v885
    %v887 = vsel %vm881, %v820, 0.0
    %v888 = vadd.f32 %v886, %v887
    %v889 = vsel %vm881, %v821, 0.0
    %v890 = vadd.f32 %v888, %v889
    %v891 = vsel %vm881, %v822, 0.0
    %v892 = vadd.f32 %v890, %v891
    %v893 = vsel %vm881, %v823, 0.0
    %v894 = vadd.f32 %v892, %v893
    %v895 = vsel %vm881, %v824, 0.0
    %v896 = vadd.f32 %v894, %v895
    %v897 = vsel %vm881, %v825, 0.0
    %v898 = vadd.f32 %v896, %v897
    %v899 = vsel %vm881, %v826, 0.0
    %v900 = vadd.f32 %v898, %v899
    %v901 = vsel %vm881, %v827, 0.0
    %v902 = vadd.f32 %v900, %v901
    %v903 = vsel %vm881, %v828, 0.0
    %v904 = vadd.f32 %v902, %v903
    %v905 = vsel %vm881, %v829, 0.0
    %v906 = vadd.f32 %v904, %v905
    %v907 = vsel %vm881, %v830, 0.0
    %v908 = vadd.f32 %v906, %v907
    %v909 = vsel %vm881, %v831, 0.0
    %v910 = vadd.f32 %v908, %v909
    %v911 = vsel %vm881, %v832, 0.0
    %v912 = vadd.f32 %v910, %v911
    %v913 = vsel %vm881, %v833, 0.0
    %v914 = vadd.f32 %v912, %v913
    %v915 = vsel %vm881, %v834, 0.0
    %v916 = vadd.f32 %v914, %v915
    %v917 = vsel %vm881, %v835, 0.0
    %v918 = vadd.f32 %v916, %v917
    %v919 = vsel %vm881, %v836, 0.0
    %v920 = vadd.f32 %v918, %v919
    %v921 = vsel %vm881, %v837, 0.0
    %v922 = vadd.f32 %v920, %v921
    %v923 = vsel %vm881, %v838, 0.0
    %v924 = vadd.f32 %v922, %v923
    %v925 = vsel %vm881, %v839, 0.0
    %v926 = vadd.f32 %v924, %v925
    %v927 = vsel %vm881, %v840, 0.0
    %v928 = vadd.f32 %v926, %v927
    %v929 = vsel %vm881, %v841, 0.0
    %v930 = vadd.f32 %v928, %v929
    %v931 = vsel %vm881, %v842, 0.0
    %v932 = vadd.f32 %v930, %v931
    %v933 = vsel %vm881, %v843, 0.0
    %v934 = vadd.f32 %v932, %v933
    %v935 = vsel %vm881, %v844, 0.0
    %v936 = vadd.f32 %v934, %v935
    %v937 = vsel %vm881, %v845, 0.0
    %v938 = vadd.f32 %v936, %v937
    %v939 = vsel %vm881, %v846, 0.0
    %v940 = vadd.f32 %v938, %v939
    %v941 = vsel %vm881, %v847, 0.0
    %v942 = vadd.f32 %v940, %v941
    %v943 = vsel %vm881, %v848, 0.0
    %v944 = vadd.f32 %v942, %v943
    %v945 = vrot.slane %v944, 4
    %v946 = vadd.f32 %v944, %v945
    %v947 = vrot.slane %v946, 2
    %v948 = vadd.f32 %v946, %v947
    %v949 = vrot.slane %v948, 1
    %v950 = vadd.f32 %v948, %v949
    %v951 = vsel %vm881, %v849, 0.0
    %v952 = vsel %vm881, %v850, 0.0
    %v953 = vadd.f32 %v951, %v952
    %v954 = vsel %vm881, %v851, 0.0
    %v955 = vadd.f32 %v953, %v954
    %v956 = vsel %vm881, %v852, 0.0
    %v957 = vadd.f32 %v955, %v956
    %v958 = vsel %vm881, %v853, 0.0
    %v959 = vadd.f32 %v957, %v958
    %v960 = vsel %vm881, %v854, 0.0
    %v961 = vadd.f32 %v959, %v960
    %v962 = vsel %vm881, %v855, 0.0
    %v963 = vadd.f32 %v961, %v962
    %v964 = vsel %vm881, %v856, 0.0
    %v965 = vadd.f32 %v963, %v964
    %v966 = vsel %vm881, %v857, 0.0
    %v967 = vadd.f32 %v965, %v966
    %v968 = vsel %vm881, %v858, 0.0
    %v969 = vadd.f32 %v967, %v968
    %v970 = vsel %vm881, %v859, 0.0
    %v971 = vadd.f32 %v969, %v970
    %v972 = vsel %vm881, %v860, 0.0
    %v973 = vadd.f32 %v971, %v972
    %v974 = vsel %vm881, %v861, 0.0
    %v975 = vadd.f32 %v973, %v974
    %v976 = vsel %vm881, %v862, 0.0
    %v977 = vadd.f32 %v975, %v976
    %v978 = vsel %vm881, %v863, 0.0
    %v979 = vadd.f32 %v977, %v978
    %v980 = vsel %vm881, %v864, 0.0
    %v981 = vadd.f32 %v979, %v980
    %v982 = vsel %vm881, %v865, 0.0
    %v983 = vadd.f32 %v981, %v982
    %v984 = vsel %vm881, %v866, 0.0
    %v985 = vadd.f32 %v983, %v984
    %v986 = vsel %vm881, %v867, 0.0
    %v987 = vadd.f32 %v985, %v986
    %v988 = vsel %vm881, %v868, 0.0
    %v989 = vadd.f32 %v987, %v988
    %v990 = vsel %vm881, %v869, 0.0
    %v991 = vadd.f32 %v989, %v990
    %v992 = vsel %vm881, %v870, 0.0
    %v993 = vadd.f32 %v991, %v992
    %v994 = vsel %vm881, %v871, 0.0
    %v995 = vadd.f32 %v993, %v994
    %v996 = vsel %vm881, %v872, 0.0
    %v997 = vadd.f32 %v995, %v996
    %v998 = vsel %vm881, %v873, 0.0
    %v999 = vadd.f32 %v997, %v998
    %v1000 = vsel %vm881, %v874, 0.0
    %v1001 = vadd.f32 %v999, %v1000
    %v1002 = vsel %vm881, %v875, 0.0
    %v1003 = vadd.f32 %v1001, %v1002
    %v1004 = vsel %vm881, %v876, 0.0
    %v1005 = vadd.f32 %v1003, %v1004
    %v1006 = vsel %vm881, %v877, 0.0
    %v1007 = vadd.f32 %v1005, %v1006
    %v1008 = vsel %vm881, %v878, 0.0
    %v1009 = vadd.f32 %v1007, %v1008
    %v1010 = vsel %vm881, %v879, 0.0
    %v1011 = vadd.f32 %v1009, %v1010
    %v1012 = vsel %vm881, %v880, 0.0
    %v1013 = vadd.f32 %v1011, %v1012
    %v1014 = vrot.slane %v1013, 4
    %v1015 = vadd.f32 %v1013, %v1014
    %v1016 = vrot.slane %v1015, 2
    %v1017 = vadd.f32 %v1015, %v1016
    %v1018 = vrot.slane %v1017, 1
    %v1019 = vadd.f32 %v1017, %v1018
    %v1020 = vld [vmem:[%s4] sm:$0xff]
    %v1021 = vld [vmem:[%s4 + $0x8] sm:$0xff]
    %v1022 = vld [vmem:[%s4 + $0x10] sm:$0xff]
    %v1023 = vld [vmem:[%s4 + $0x18] sm:$0xff]
    %v1024 = vld [vmem:[%s5] sm:$0x1]
    %v1026 = vlaneseq
    %v1027 = vshrl.u32 %v1026, 7
    %v1028 = vsub.s32 0, %v1027
    %v1029 = vrot.slane %v1024, %v1028
    %vm1033 = vcmask 1041409
    %v1034 = vsel %vm1033, %v1019, %v950
    %v1035 = vsel %vm881, %v1034, 0
    %1037 = vmatprep.subr.mxu0 0.0
    %1038 = vmatpush1.msra.mxu0 %v1020
    %1039 = vmatprep.subr.mxu0 0.0
    %1040 = vmatpush1.msra.mxu0 %v1021
    %1041 = vmatprep.subr.mxu0 0.0
    %1042 = vmatpush1.msra.mxu0 %v1022
    %1043 = vmatprep.subr.mxu0 0.0
    %1044 = vmatpush1.msra.mxu0 %v1023
    %1045 = vmatprep.subr.mxu0 0.0
    %1046 = vmatpush1.msra.mxu0 0.0
    %1047 = vmatprep.subr.mxu0 0.0
    %1048 = vmatpush1.msra.mxu0 0.0
    %1049 = vmatprep.subr.mxu0 0.0
    %1050 = vmatpush1.msra.mxu0 0.0
    %1051 = vmatprep.subr.mxu0 0.0
    %1052 = vmatpush1.msra.mxu0 0.0
    %1053 = vmatprep.subr.mxu0 0.0
    %1054 = vmatpush1.msra.mxu0 0.0
    %1055 = vmatprep.subr.mxu0 0.0
    %1056 = vmatpush1.msra.mxu0 0.0
    %1057 = vmatprep.subr.mxu0 0.0
    %1058 = vmatpush1.msra.mxu0 0.0
    %1059 = vmatprep.subr.mxu0 0.0
    %1060 = vmatpush1.msra.mxu0 0.0
    %1061 = vmatprep.subr.mxu0 0.0
    %1062 = vmatpush1.msra.mxu0 0.0
    %1063 = vmatprep.subr.mxu0 0.0
    %1064 = vmatpush1.msra.mxu0 0.0
    %1065 = vmatprep.subr.mxu0 0.0
    %1066 = vmatpush1.msra.mxu0 0.0
    %1067 = vmatprep.subr.mxu0 0.0
    %1068 = vmatpush1.msra.mxu0 0.0
    %1069 = vmatprep.subr.mxu0 0.0
    %1070 = vmatpush1.msra.mxu0 0.0
    %1071 = vmatprep.subr.mxu0 0.0
    %1072 = vmatpush1.msra.mxu0 0.0
    %1073 = vmatprep.subr.mxu0 0.0
    %1074 = vmatpush1.msra.mxu0 0.0
    %1075 = vmatprep.subr.mxu0 0.0
    %1076 = vmatpush1.msra.mxu0 0.0
    %1077 = vmatprep.subr.mxu0 0.0
    %1078 = vmatpush1.msra.mxu0 0.0
    %1079 = vmatprep.subr.mxu0 0.0
    %1080 = vmatpush1.msra.mxu0 0.0
    %1081 = vmatprep.subr.mxu0 0.0
    %1082 = vmatpush1.msra.mxu0 0.0
    %1083 = vmatprep.subr.mxu0 0.0
    %1084 = vmatpush1.msra.mxu0 0.0
    %1085 = vmatprep.subr.mxu0 0.0
    %1086 = vmatpush1.msra.mxu0 0.0
    %1087 = vmatprep.subr.mxu0 0.0
    %1088 = vmatpush1.msra.mxu0 0.0
    %1089 = vmatprep.subr.mxu0 0.0
    %1090 = vmatpush1.msra.mxu0 0.0
    %1091 = vmatprep.subr.mxu0 0.0
    %1092 = vmatpush1.msra.mxu0 0.0
    %1093 = vmatprep.subr.mxu0 0.0
    %1094 = vmatpush1.msra.mxu0 0.0
    %1095 = vmatprep.subr.mxu0 0.0
    %1096 = vmatpush1.msra.mxu0 0.0
    %1097 = vmatprep.subr.mxu0 0.0
    %1098 = vmatpush1.msra.mxu0 0.0
    %1099 = vmatprep.subr.mxu0 0.0
    %1100 = vmatpush1.msra.mxu0 0.0
    %1101 = vmatprep.mubr.f32.mxu0 0.0
    %1102 = vmatmul.mubr.f32.gmra.mrb[0].mxu0 %v1035
    %v1103 = vpop.f32.mrb[0].mxu0
    %v1104 = vadd.f32 %v1029, %v1103
    %v1105 = vpop.f32.mrb[0].mxu0
    %1106 = vdwg.mxu0
    %vm1107 = vcmask 140288
    %1108 = vst.msk [vmem:[#allocation2] sm:$0x3] %vm1107, %v1104
    // Predicated region
    $region26: #{tpu_custom_call.1} parent=1 // pred_check
      _
    $region27: #{tpu_custom_call.1} parent=1 // pred_check_branch
      %1110 = sbr.rel (0) target = $region29
    $region28: #{tpu_custom_call.1} parent=1 // pred_region
      %s1112 = ssub.s32 32, 32
      %1113 = vsyncadd [#allocation3], %s1112
      %s1115 = sshll.u32 [#allocation2], 4
      %s1116 = int_to_ptr.vmem [resolvable:$true] %s1115
      %1118 = dma.vmem_to_hbm [thread:$0]  %s1116, 32, %s6, [#allocation3]
    $region29: #{tpu_custom_call.1} parent=1 // pred_fallthru
      _
    // Predicated region
    $region30: #{tpu_custom_call.1} parent=1 // pred_check
      _
    $region31: #{tpu_custom_call.1} parent=1 // pred_check_branch
      %1120 = sbr.rel (0) target = $region33
    $region32: #{tpu_custom_call.1} parent=1 // pred_region
      %1121 = dma.done [#allocation3], 32
    $region33: #{tpu_custom_call.1} parent=1 // pred_fallthru
      _
    %1122 = vsyncpa [#allocation3], 1

</llo_original>
